<compile_context>
chip_gen: v7x
topology: tpu7x:2x2x1
jax: 0.10.0
libtpu: 0.0.40
codegen_flags: <defaults>
</compile_context>

<pallas_src>
import functools

import jax
import jax.numpy as jnp
from jax.experimental import pallas as pl
from jax.experimental.pallas import tpu as pltpu


def _round_up(x, m):
    return (x + m - 1) // m * m


def stochastic_kernel(x_ref, w_ref, b_ref, mu_ref, std_ref):
    E = mu_ref.shape[-1]

    # Single fused matmul on the MXU: (tm, E) @ (E, 2E) -> (tm, 2E), f32 accumulate.
    x = x_ref[...].astype(w_ref.dtype)
    acc = jnp.dot(x, w_ref[...], preferred_element_type=jnp.float32)
    acc = acc + b_ref[...]                       # bias add in f32

    mu = acc[:, :E]
    log_var = acc[:, E:]

    # std = exp(0.5 * log_var)   (EUP)
    std_ref[...] = jnp.exp(0.5 * log_var).astype(std_ref.dtype)

    # l2-normalize mu along the feature axis: rsqrt (EUP) + multiply (VPU)
    # instead of sqrt + divide.
    inv_norm = jax.lax.rsqrt(jnp.sum(mu * mu, axis=-1, keepdims=True))
    mu_ref[...] = (mu * inv_norm).astype(mu_ref.dtype)


def prepare_params(w_mu, b_mu, w_var, b_var, compute_dtype=jnp.float32):
    """One-time parameter prep (keep this out of the per-call hot path).

    w_mu, w_var: (E, E) in PyTorch (out, in) convention. b_*: (E,).
    Returns the fused (E, 2E) weight in `compute_dtype` and a (1, 2E) f32 bias row.
    """
    E = w_mu.shape[0]
    w_cat = jnp.concatenate([w_mu.T, w_var.T], axis=1).astype(compute_dtype)   # (E, 2E)
    b_cat = jnp.concatenate([b_mu, b_var]).reshape(1, 2 * E).astype(jnp.float32)
    return w_cat, b_cat


@functools.partial(jax.jit, static_argnames=("block_rows",))
def stochastic_layer(x, w_cat, b_cat, *, block_rows=512):
    """x: (B, E) activations. w_cat: (E, 2E), b_cat: (1, 2E) from prepare_params."""
    B, E = x.shape
    assert w_cat.shape == (E, 2 * E) and b_cat.shape == (1, 2 * E)

    tm = min(_round_up(block_rows, 8), _round_up(B, 8))
    grid = (pl.cdiv(B, tm),)

    row_spec = pl.BlockSpec((tm, E), lambda i: (i, 0))              # tiled along batch
    resident = lambda shape: pl.BlockSpec(shape, lambda i: (0, 0))  # stays in VMEM

    mu, std = pl.pallas_call(
        stochastic_kernel,
        grid=grid,
        in_specs=[
            row_spec,                       # x
            resident((E, 2 * E)),           # fused [W_mu^T | W_var^T]
            resident((1, 2 * E)),           # fused [b_mu | b_var]
        ],
        out_specs=(
            row_spec,                       # mu (l2-normalized)
            row_spec,                       # std
        ),
        out_shape=(
            jax.ShapeDtypeStruct((B, E), x.dtype),
            jax.ShapeDtypeStruct((B, E), x.dtype),
        ),
        compiler_params=pltpu.CompilerParams(
            dimension_semantics=("parallel",),     # shard batch blocks across v7x's 2 TCs
            vmem_limit_bytes=48 * 1024 * 1024,     # > 16/32 MiB defaults, < v7x 64 MiB
        ),
    )(x, w_cat, b_cat)
    return mu, std


def _reference(x, w_mu, b_mu, w_var, b_var):
    mu = x @ w_mu.T + b_mu
    log_var = x @ w_var.T + b_var
    std = jnp.exp(0.5 * log_var)
    mu = mu / jnp.linalg.norm(mu, axis=1, keepdims=True)
    return mu, std


if __name__ == "__main__":
    B = 64          # batch
    E = 32          # embedding_size

    key = jax.random.PRNGKey(0)
    kx, kwm, kbm, kwv, kbv = jax.random.split(key, 5)

    # Deterministic "synthetic checkpoint": uniform init like nn.Linear.
    bound = 1.0 / jnp.sqrt(E)
    x = jax.random.normal(kx, (B, E), dtype=jnp.float32)
    w_mu = jax.random.uniform(kwm, (E, E), minval=-bound, maxval=bound, dtype=jnp.float32)
    b_mu = jax.random.uniform(kbm, (E,), minval=-bound, maxval=bound, dtype=jnp.float32)
    w_var = jax.random.uniform(kwv, (E, E), minval=-bound, maxval=bound, dtype=jnp.float32)
    b_var = jax.random.uniform(kbv, (E,), minval=-bound, maxval=bound, dtype=jnp.float32)

    mu_ref, std_ref = _reference(x, w_mu, b_mu, w_var, b_var)

    # f32 path, single batch block.
    w_cat, b_cat = prepare_params(w_mu, b_mu, w_var, b_var, compute_dtype=jnp.float32)
    mu, std = stochastic_layer(x, w_cat, b_cat)
    jax.block_until_ready((mu, std))
    assert jnp.allclose(mu, mu_ref, atol=1e-5, rtol=1e-5)
    assert jnp.allclose(std, std_ref, atol=1e-5, rtol=1e-5)

    # f32 path, multi-step batch grid (exercises the pipelined row tiling).
    mu_t, std_t = stochastic_layer(x, w_cat, b_cat, block_rows=16)
    jax.block_until_ready((mu_t, std_t))
    assert jnp.allclose(mu_t, mu_ref, atol=1e-5, rtol=1e-5)
    assert jnp.allclose(std_t, std_ref, atol=1e-5, rtol=1e-5)

    # bf16-MXU path (f32 accumulate / epilogue) — looser tolerance.
    w_cat_bf, b_cat_bf = prepare_params(w_mu, b_mu, w_var, b_var, compute_dtype=jnp.bfloat16)
    mu_b, std_b = stochastic_layer(x, w_cat_bf, b_cat_bf)
    jax.block_until_ready((mu_b, std_b))
    assert jnp.allclose(mu_b, mu_ref, atol=2e-2, rtol=2e-2)
    assert jnp.allclose(std_b, std_ref, atol=2e-2, rtol=2e-2)

    print("KERNEL_OK")
</pallas_src>

<mosaic_0001>
module attributes {stable_mosaic.version = 11 : i64} {
  func.func @stochastic_kernel(%arg0: i32, %arg1: memref<64x32xf32, #tpu.memory_space<vmem>>, %arg2: memref<32x64xf32, #tpu.memory_space<vmem>>, %arg3: memref<1x64xf32, #tpu.memory_space<vmem>>, %arg4: memref<64x32xf32, #tpu.memory_space<vmem>>, %arg5: memref<64x32xf32, #tpu.memory_space<vmem>>) attributes {dimension_semantics = [#tpu.dimension_semantics<parallel>], iteration_bounds = array<i64: 1>, scalar_prefetch = 0 : i64, scratch_operands = 0 : i64, tpu.core_type = #tpu.core_type<tc>, window_params = [{transform_indices = @transform_0, window_bounds = array<i64: 64, 32>}, {pipeline_mode = #tpu.pipeline_mode<synchronous>, transform_indices = @transform_1, window_bounds = array<i64: 32, 64>}, {pipeline_mode = #tpu.pipeline_mode<synchronous>, transform_indices = @transform_2, window_bounds = array<i64: 1, 64>}, {transform_indices = @transform_3, window_bounds = array<i64: 64, 32>}, {transform_indices = @transform_4, window_bounds = array<i64: 64, 32>}]} {
    %c0 = arith.constant 0 : index
    %c0_0 = arith.constant 0 : index
    %0 = vector.load %arg1[%c0, %c0_0] : memref<64x32xf32, #tpu.memory_space<vmem>>, vector<64x32xf32>
    %c0_1 = arith.constant 0 : index
    %c0_2 = arith.constant 0 : index
    %1 = vector.load %arg2[%c0_1, %c0_2] : memref<32x64xf32, #tpu.memory_space<vmem>>, vector<32x64xf32>
    %cst = arith.constant dense<0.000000e+00> : vector<64x64xf32>
    %2 = tpu.matmul %0, %1, %cst {dimension_numbers = #tpu.dot_dimension_numbers<[1], [0], [0], [1], [0, 0, 1, 1], [], []>} : vector<64x32xf32>, vector<32x64xf32>, vector<64x64xf32> -> vector<64x64xf32>
    %c0_3 = arith.constant 0 : index
    %c0_4 = arith.constant 0 : index
    %3 = vector.load %arg3[%c0_3, %c0_4] : memref<1x64xf32, #tpu.memory_space<vmem>>, vector<1x64xf32>
    %4 = vector.broadcast %3 : vector<1x64xf32> to vector<64x64xf32>
    %5 = arith.addf %2, %4 : vector<64x64xf32>
    %6 = vector.extract_strided_slice %5 {offsets = [0, 0], sizes = [64, 32], strides = [1, 1]} : vector<64x64xf32> to vector<64x32xf32>
    %7 = vector.extract_strided_slice %5 {offsets = [0, 32], sizes = [64, 32], strides = [1, 1]} : vector<64x64xf32> to vector<64x32xf32>
    %cst_5 = arith.constant 5.000000e-01 : f32
    %8 = vector.broadcast %cst_5 : f32 to vector<64x32xf32>
    %9 = arith.mulf %8, %7 : vector<64x32xf32>
    %10 = math.exp %9 : vector<64x32xf32>
    %c0_6 = arith.constant 0 : index
    %c0_7 = arith.constant 0 : index
    %11 = vector.load %arg5[%c0_6, %c0_7] : memref<64x32xf32, #tpu.memory_space<vmem>>, vector<64x32xf32>
    tpu.vector_store %arg5[%c0_6, %c0_7], %10 {strides = array<i32>} : memref<64x32xf32, #tpu.memory_space<vmem>>, vector<64x32xf32>,
    %12 = arith.mulf %6, %6 : vector<64x32xf32>
    %cst_8 = arith.constant dense<0.000000e+00> : vector<64xf32>
    %13 = vector.multi_reduction <add>, %12, %cst_8 [1] : vector<64x32xf32> to vector<64xf32>
    %14 = vector.shape_cast %13 : vector<64xf32> to vector<64x1xf32>
    %15 = math.rsqrt %14 : vector<64x1xf32>
    %16 = vector.broadcast %15 : vector<64x1xf32> to vector<64x32xf32>
    %17 = arith.mulf %6, %16 : vector<64x32xf32>
    %c0_9 = arith.constant 0 : index
    %c0_10 = arith.constant 0 : index
    %18 = vector.load %arg4[%c0_9, %c0_10] : memref<64x32xf32, #tpu.memory_space<vmem>>, vector<64x32xf32>
    tpu.vector_store %arg4[%c0_9, %c0_10], %17 {strides = array<i32>} : memref<64x32xf32, #tpu.memory_space<vmem>>, vector<64x32xf32>,
    return
  }
  func.func @transform_0(%arg0: i32) -> (i32, i32) {
    %c0_i32 = arith.constant 0 : i32
    %c0_i32_0 = arith.constant 0 : i32
    return %arg0, %c0_i32 : i32, i32
  }
  func.func @transform_1(%arg0: i32) -> (i32, i32) {
    %c0_i32 = arith.constant 0 : i32
    %c0_i32_0 = arith.constant 0 : i32
    %c0_i32_1 = arith.constant 0 : i32
    return %c0_i32, %c0_i32_0 : i32, i32
  }
  func.func @transform_2(%arg0: i32) -> (i32, i32) {
    %c0_i32 = arith.constant 0 : i32
    %c0_i32_0 = arith.constant 0 : i32
    %c0_i32_1 = arith.constant 0 : i32
    return %c0_i32, %c0_i32_0 : i32, i32
  }
  func.func @transform_3(%arg0: i32) -> (i32, i32) {
    %c0_i32 = arith.constant 0 : i32
    %c0_i32_0 = arith.constant 0 : i32
    return %arg0, %c0_i32 : i32, i32
  }
  func.func @transform_4(%arg0: i32) -> (i32, i32) {
    %c0_i32 = arith.constant 0 : i32
    %c0_i32_0 = arith.constant 0 : i32
    return %arg0, %c0_i32 : i32, i32
  }
}

</mosaic_0001>

<llo_original>
// kernel: stochastic_layer.1
$region0: #{stochastic_layer.1}
  #allocation0 [shape = 'u32[]', space=smem, size = 0x4, offset = 0x4, fixed_abs, tag = 'smem constant byte address 0x4 - core index']
  #allocation1 [shape = 'u32[144,128]{1,0:T(1,128)}', space=vmem, size = 0x12000, scoped, tag = 'internal scratch']
  %s0 = inlined_call_operand.vmem [shape: f32[64,32], index: 0, kind: input, shape index: {}]
  %s1 = inlined_call_operand.vmem [shape: f32[32,64], index: 1, kind: input, shape index: {}]
  %s2 = inlined_call_operand.vmem [shape: f32[1,64], index: 2, kind: input, shape index: {}]
  %s3 = inlined_call_operand.vmem [shape: f32[64,32], index: 3, kind: output, shape index: {0}]
  %s4 = inlined_call_operand.vmem [shape: f32[64,32], index: 4, kind: output, shape index: {1}]
  %5 = xla_tuple %s3, %s4
  %s6 = sld [smem:[#allocation0]]
  $region30: #{stochastic_layer.1} parent=0
    _
  %s8 = ssub.s32 1, %s6
  %s9 = scalar_select 0, %s8, %s6
  // Predicated region
  $region2: #{stochastic_layer.1} parent=0 // pred_check
    _
  $region3: #{stochastic_layer.1} parent=0 // pred_check_branch
    %11 = sbr.rel (0) target = $region5
  $region4: #{stochastic_layer.1} parent=0 // pred_region
    _
  $region5: #{stochastic_layer.1} parent=0 // pred_fallthru
    _
  // Predicated region
  $region6: #{stochastic_layer.1} parent=0 // pred_check
    _
  $region7: #{stochastic_layer.1} parent=0 // pred_check_branch
    %13 = sbr.rel (0) target = $region9
  $region8: #{stochastic_layer.1} parent=0 // pred_region
    _
  $region9: #{stochastic_layer.1} parent=0 // pred_fallthru
    _
  // Predicated region
  $region10: #{stochastic_layer.1} parent=0 // pred_check
    _
  $region11: #{stochastic_layer.1} parent=0 // pred_check_branch
    %15 = sbr.rel (0) target = $region13
  $region12: #{stochastic_layer.1} parent=0 // pred_region
    _
  $region13: #{stochastic_layer.1} parent=0 // pred_fallthru
    _
  %v16 = vld [vmem:[%s0] sm:$0xff]
  %v17 = vld [vmem:[%s0 + $0x8] sm:$0xff]
  %v18 = vld [vmem:[%s0 + $0x10] sm:$0xff]
  %v19 = vld [vmem:[%s0 + $0x18] sm:$0xff]
  %v20 = vld [vmem:[%s0 + $0x20] sm:$0xff]
  %v21 = vld [vmem:[%s0 + $0x28] sm:$0xff]
  %v22 = vld [vmem:[%s0 + $0x30] sm:$0xff]
  %v23 = vld [vmem:[%s0 + $0x38] sm:$0xff]
  %v24 = vld [vmem:[%s1] sm:$0xff]
  %v25 = vld [vmem:[%s1 + $0x8] sm:$0xff]
  %v26 = vld [vmem:[%s1 + $0x10] sm:$0xff]
  %v27 = vld [vmem:[%s1 + $0x18] sm:$0xff]
  %v28 = vld [vmem:[%s2] sm:$0x1]
  %v30 = vlaneseq
  %v31 = vshrl.u32 %v30, 7
  %v32 = vsub.s32 0, %v31
  %v33 = vrot.slane %v28, %v32
  %vm35 = vcmask 261120
  %v37 = vsel %vm35, %v16, 0
  %v40 = vsel %vm35, %v17, 0
  %v43 = vsel %vm35, %v18, 0
  %v46 = vsel %vm35, %v19, 0
  %v49 = vsel %vm35, %v20, 0
  %v52 = vsel %vm35, %v21, 0
  %v55 = vsel %vm35, %v22, 0
  %v58 = vsel %vm35, %v23, 0
  %60 = vmatprep.subr.mxu0 0.0
  %61 = vmatpush1.msra.mxu0 %v24
  %62 = vmatprep.subr.mxu0 0.0
  %63 = vmatpush1.msra.mxu0 %v25
  %64 = vmatprep.subr.mxu0 0.0
  %65 = vmatpush1.msra.mxu0 %v26
  %66 = vmatprep.subr.mxu0 0.0
  %67 = vmatpush1.msra.mxu0 %v27
  %68 = vmatprep.subr.mxu0 0.0
  %69 = vmatpush1.msra.mxu0 0.0
  %70 = vmatprep.subr.mxu0 0.0
  %71 = vmatpush1.msra.mxu0 0.0
  %72 = vmatprep.subr.mxu0 0.0
  %73 = vmatpush1.msra.mxu0 0.0
  %74 = vmatprep.subr.mxu0 0.0
  %75 = vmatpush1.msra.mxu0 0.0
  %76 = vmatprep.subr.mxu0 0.0
  %77 = vmatpush1.msra.mxu0 0.0
  %78 = vmatprep.subr.mxu0 0.0
  %79 = vmatpush1.msra.mxu0 0.0
  %80 = vmatprep.subr.mxu0 0.0
  %81 = vmatpush1.msra.mxu0 0.0
  %82 = vmatprep.subr.mxu0 0.0
  %83 = vmatpush1.msra.mxu0 0.0
  %84 = vmatprep.subr.mxu0 0.0
  %85 = vmatpush1.msra.mxu0 0.0
  %86 = vmatprep.subr.mxu0 0.0
  %87 = vmatpush1.msra.mxu0 0.0
  %88 = vmatprep.subr.mxu0 0.0
  %89 = vmatpush1.msra.mxu0 0.0
  %90 = vmatprep.subr.mxu0 0.0
  %91 = vmatpush1.msra.mxu0 0.0
  %92 = vmatprep.subr.mxu0 0.0
  %93 = vmatpush1.msra.mxu0 0.0
  %94 = vmatprep.subr.mxu0 0.0
  %95 = vmatpush1.msra.mxu0 0.0
  %96 = vmatprep.subr.mxu0 0.0
  %97 = vmatpush1.msra.mxu0 0.0
  %98 = vmatprep.subr.mxu0 0.0
  %99 = vmatpush1.msra.mxu0 0.0
  %100 = vmatprep.subr.mxu0 0.0
  %101 = vmatpush1.msra.mxu0 0.0
  %102 = vmatprep.subr.mxu0 0.0
  %103 = vmatpush1.msra.mxu0 0.0
  %104 = vmatprep.subr.mxu0 0.0
  %105 = vmatpush1.msra.mxu0 0.0
  %106 = vmatprep.subr.mxu0 0.0
  %107 = vmatpush1.msra.mxu0 0.0
  %108 = vmatprep.subr.mxu0 0.0
  %109 = vmatpush1.msra.mxu0 0.0
  %110 = vmatprep.subr.mxu0 0.0
  %111 = vmatpush1.msra.mxu0 0.0
  %112 = vmatprep.subr.mxu0 0.0
  %113 = vmatpush1.msra.mxu0 0.0
  %114 = vmatprep.subr.mxu0 0.0
  %115 = vmatpush1.msra.mxu0 0.0
  %116 = vmatprep.subr.mxu0 0.0
  %117 = vmatpush1.msra.mxu0 0.0
  %118 = vmatprep.subr.mxu0 0.0
  %119 = vmatpush1.msra.mxu0 0.0
  %120 = vmatprep.subr.mxu0 0.0
  %121 = vmatpush1.msra.mxu0 0.0
  %122 = vmatprep.subr.mxu0 0.0
  %123 = vmatpush1.msra.mxu0 0.0
  %124 = vmatprep.mubr.f32.mxu0 0.0
  %125 = vmatmul.mubr.f32.gmra.mrb[0].mxu0 %v37
  %v126 = vpop.f32.mrb[0].mxu0
  %v127 = vadd.f32 %v33, %v126
  %v128 = vpop.f32.mrb[0].mxu0
  %129 = vmatprep.mubr.f32.mxu0 0.0
  %130 = vmatmul.mubr.f32.gmra.mrb[0].mxu0 %v40
  %v131 = vpop.f32.mrb[0].mxu0
  %v132 = vadd.f32 %v33, %v131
  %v133 = vpop.f32.mrb[0].mxu0
  %134 = vmatprep.mubr.f32.mxu0 0.0
  %135 = vmatmul.mubr.f32.gmra.mrb[0].mxu0 %v43
  %v136 = vpop.f32.mrb[0].mxu0
  %v137 = vadd.f32 %v33, %v136
  %v138 = vpop.f32.mrb[0].mxu0
  %139 = vmatprep.mubr.f32.mxu0 0.0
  %140 = vmatmul.mubr.f32.gmra.mrb[0].mxu0 %v46
  %v141 = vpop.f32.mrb[0].mxu0
  %v142 = vadd.f32 %v33, %v141
  %v143 = vpop.f32.mrb[0].mxu0
  %144 = vmatprep.mubr.f32.mxu0 0.0
  %145 = vmatmul.mubr.f32.gmra.mrb[0].mxu0 %v49
  %v146 = vpop.f32.mrb[0].mxu0
  %v147 = vadd.f32 %v33, %v146
  %v148 = vpop.f32.mrb[0].mxu0
  %149 = vmatprep.mubr.f32.mxu0 0.0
  %150 = vmatmul.mubr.f32.gmra.mrb[0].mxu0 %v52
  %v151 = vpop.f32.mrb[0].mxu0
  %v152 = vadd.f32 %v33, %v151
  %v153 = vpop.f32.mrb[0].mxu0
  %154 = vmatprep.mubr.f32.mxu0 0.0
  %155 = vmatmul.mubr.f32.gmra.mrb[0].mxu0 %v55
  %v156 = vpop.f32.mrb[0].mxu0
  %v157 = vadd.f32 %v33, %v156
  %v158 = vpop.f32.mrb[0].mxu0
  %159 = vmatprep.mubr.f32.mxu0 0.0
  %160 = vmatmul.mubr.f32.gmra.mrb[0].mxu0 %v58
  %v161 = vpop.f32.mrb[0].mxu0
  %v162 = vadd.f32 %v33, %v161
  %v163 = vpop.f32.mrb[0].mxu0
  %164 = vdwg.mxu0
  %v165 = vmul.f32 %v127, 0.5
  %v166 = vmul.f32 %v132, 0.5
  %v167 = vmul.f32 %v137, 0.5
  %v168 = vmul.f32 %v142, 0.5
  %v169 = vmul.f32 %v147, 0.5
  %v170 = vmul.f32 %v152, 0.5
  %v171 = vmul.f32 %v157, 0.5
  %v172 = vmul.f32 %v162, 0.5
  %v173 = vmul.f32 %v165, 1.442695
  %v174 = vpow.pop %v173
  %v175 = vmul.f32 %v166, 1.442695
  %v176 = vpow.pop %v175
  %v177 = vmul.f32 %v167, 1.442695
  %v178 = vpow.pop %v177
  %v179 = vmul.f32 %v168, 1.442695
  %v180 = vpow.pop %v179
  %v181 = vmul.f32 %v169, 1.442695
  %v182 = vpow.pop %v181
  %v183 = vmul.f32 %v170, 1.442695
  %v184 = vpow.pop %v183
  %v185 = vmul.f32 %v171, 1.442695
  %v186 = vpow.pop %v185
  %v187 = vmul.f32 %v172, 1.442695
  %v188 = vpow.pop %v187
  %197 = vrot.lane.b32.xlu0 %v174, 96
  %v198 = vpop.permute.xlu0 %197
  %199 = vrot.lane.b32.xlu0 %v176, 96
  %v200 = vpop.permute.xlu0 %199
  %201 = vrot.lane.b32.xlu0 %v178, 96
  %v202 = vpop.permute.xlu0 %201
  %203 = vrot.lane.b32.xlu0 %v180, 96
  %v204 = vpop.permute.xlu0 %203
  %205 = vrot.lane.b32.xlu0 %v182, 96
  %v206 = vpop.permute.xlu0 %205
  %207 = vrot.lane.b32.xlu0 %v184, 96
  %v208 = vpop.permute.xlu0 %207
  %209 = vrot.lane.b32.xlu0 %v186, 96
  %v210 = vpop.permute.xlu0 %209
  %211 = vrot.lane.b32.xlu0 %v188, 96
  %v212 = vpop.permute.xlu0 %211
  %221 = vst.msk [vmem:[%s4] sm:$0xff] %vm35, %v198
  %222 = vst.msk [vmem:[%s4 + $0x8] sm:$0xff] %vm35, %v200
  %223 = vst.msk [vmem:[%s4 + $0x10] sm:$0xff] %vm35, %v202
  %224 = vst.msk [vmem:[%s4 + $0x18] sm:$0xff] %vm35, %v204
  %225 = vst.msk [vmem:[%s4 + $0x20] sm:$0xff] %vm35, %v206
  %226 = vst.msk [vmem:[%s4 + $0x28] sm:$0xff] %vm35, %v208
  %227 = vst.msk [vmem:[%s4 + $0x30] sm:$0xff] %vm35, %v210
  %228 = vst.msk [vmem:[%s4 + $0x38] sm:$0xff] %vm35, %v212
  %v229 = vmul.f32 %v127, %v127
  %v230 = vmul.f32 %v132, %v132
  %v231 = vmul.f32 %v137, %v137
  %v232 = vmul.f32 %v142, %v142
  %v233 = vmul.f32 %v147, %v147
  %v234 = vmul.f32 %v152, %v152
  %v235 = vmul.f32 %v157, %v157
  %v236 = vmul.f32 %v162, %v162
  %v237 = vsel %vm35, %v229, 0.0
  %238 = vadd.xlane.f32.xlu0 %v237
  %v239 = vpop.xlane.xlu0 %238
  %v240 = vsel %vm35, %v230, 0.0
  %241 = vadd.xlane.f32.xlu0 %v240
  %v242 = vpop.xlane.xlu0 %241
  %v243 = vsel %vm35, %v231, 0.0
  %244 = vadd.xlane.f32.xlu0 %v243
  %v245 = vpop.xlane.xlu0 %244
  %v246 = vsel %vm35, %v232, 0.0
  %247 = vadd.xlane.f32.xlu0 %v246
  %v248 = vpop.xlane.xlu0 %247
  %v249 = vsel %vm35, %v233, 0.0
  %250 = vadd.xlane.f32.xlu0 %v249
  %v251 = vpop.xlane.xlu0 %250
  %v252 = vsel %vm35, %v234, 0.0
  %253 = vadd.xlane.f32.xlu0 %v252
  %v254 = vpop.xlane.xlu0 %253
  %v255 = vsel %vm35, %v235, 0.0
  %256 = vadd.xlane.f32.xlu0 %v255
  %v257 = vpop.xlane.xlu0 %256
  %v258 = vsel %vm35, %v236, 0.0
  %259 = vadd.xlane.f32.xlu0 %v258
  %v260 = vpop.xlane.xlu0 %259
  %v261 = vrsqrt.pop %v239
  %v262 = vrsqrt.pop %v242
  %v263 = vrsqrt.pop %v245
  %v264 = vrsqrt.pop %v248
  %v265 = vrsqrt.pop %v251
  %v266 = vrsqrt.pop %v254
  %v267 = vrsqrt.pop %v257
  %v268 = vrsqrt.pop %v260
  %v269 = vmul.f32 %v127, %v261
  %v270 = vmul.f32 %v132, %v262
  %v271 = vmul.f32 %v137, %v263
  %v272 = vmul.f32 %v142, %v264
  %v273 = vmul.f32 %v147, %v265
  %v274 = vmul.f32 %v152, %v266
  %v275 = vmul.f32 %v157, %v267
  %v276 = vmul.f32 %v162, %v268
  %277 = vst.msk [vmem:[%s3] sm:$0xff] %vm35, %v269
  %278 = vst.msk [vmem:[%s3 + $0x8] sm:$0xff] %vm35, %v270
  %279 = vst.msk [vmem:[%s3 + $0x10] sm:$0xff] %vm35, %v271
  %280 = vst.msk [vmem:[%s3 + $0x18] sm:$0xff] %vm35, %v272
  %281 = vst.msk [vmem:[%s3 + $0x20] sm:$0xff] %vm35, %v273
  %282 = vst.msk [vmem:[%s3 + $0x28] sm:$0xff] %vm35, %v274
  %283 = vst.msk [vmem:[%s3 + $0x30] sm:$0xff] %vm35, %v275
  %284 = vst.msk [vmem:[%s3 + $0x38] sm:$0xff] %vm35, %v276
  // Predicated region
  $region14: #{stochastic_layer.1} parent=0 // pred_check
    _
  $region15: #{stochastic_layer.1} parent=0 // pred_check_branch
    %286 = sbr.rel (0) target = $region17
  $region16: #{stochastic_layer.1} parent=0 // pred_region
    _
  $region17: #{stochastic_layer.1} parent=0 // pred_fallthru
    _
  // Predicated region
  $region18: #{stochastic_layer.1} parent=0 // pred_check
    _
  $region19: #{stochastic_layer.1} parent=0 // pred_check_branch
    %288 = sbr.rel (0) target = $region21
  $region20: #{stochastic_layer.1} parent=0 // pred_region
    _
  $region21: #{stochastic_layer.1} parent=0 // pred_fallthru
    _
  // Predicated region
  $region22: #{stochastic_layer.1} parent=0 // pred_check
    _
  $region23: #{stochastic_layer.1} parent=0 // pred_check_branch
    %290 = sbr.rel (0) target = $region25
  $region24: #{stochastic_layer.1} parent=0 // pred_region
    _
  $region25: #{stochastic_layer.1} parent=0 // pred_fallthru
    _
  // Predicated region
  $region26: #{stochastic_layer.1} parent=0 // pred_check
    _
  $region27: #{stochastic_layer.1} parent=0 // pred_check_branch
    %292 = sbr.rel (0) target = $region29
  $region28: #{stochastic_layer.1} parent=0 // pred_region
    _
  $region29: #{stochastic_layer.1} parent=0 // pred_fallthru
    _

</llo_original>
